<compile_context>
chip_gen: v7x
topology: tpu7x:2x2x1
jax: 0.10.0
libtpu: 0.0.40
codegen_flags: <defaults>
</compile_context>

<pallas_src>
from functools import partial

import numpy as np
import jax
import jax.numpy as jnp
from jax.experimental import pallas as pl
from jax.experimental.pallas import tpu as pltpu


def quad_norm_kernel(x1_ref, s_ref, out_ref):
    # x1_ref:  (TR, 128) VMEM tile, batch lane-dense (x[:, 0] only)
    # s_ref:   (10,)     SMEM folded scalar coefficients
    # out_ref: (TR, 128) VMEM, f32
    delta    = s_ref[0]
    neg_dt   = s_ref[1]   # -dt
    a10      = s_ref[2]   # A[1,0]
    tw_atp01 = s_ref[3]   # 2 * ATP[0,1]
    tw_atp11 = s_ref[4]   # 2 * ATP[1,1]
    k00      = s_ref[5]   # 2 * ATP[0,0] * dh00
    k10      = s_ref[6]   # 2 * ATP[1,0] * dh00
    c_atpdh  = s_ref[7]   # 4 * (m01^2 + m11^2)                 (batch-invariant)
    p_norm   = s_ref[8]   # ||P||_2
    c2       = s_ref[9]   # r - p_norm*(dh00^2+dh01^2+dh11^2)   (batch-invariant)

    x1 = x1_ref[...].astype(jnp.float32)               # (TR, 128), f32 math always

    # Only Dh[1,0] depends on x:  dh10 = -dt*cos(x1 + delta) - A[1,0]
    dh10 = neg_dt * jnp.cos(x1 + delta) - a10

    # n00 = 2*ATPDh[0,0], n10 = 2*ATPDh[1,0]  (the 2x factor folds the 2*sqrt).
    n00 = k00 + tw_atp01 * dh10
    n10 = k10 + tw_atp11 * dh10

    # 2*sqrt(||ATPDh||_F^2) == sqrt(n00^2 + n10^2 + c_atpdh)
    quad = jnp.sqrt(n00 * n00 + n10 * n10 + c_atpdh)

    out_ref[...] = (c2 - p_norm * (dh10 * dh10) - quad).astype(out_ref.dtype)


def _fold_scalars(a, atp, scalars):
    """Constant-fold all batch-invariant algebra into a 1-D scalar vector (traced)."""
    dt, delta, r, p_norm = scalars[0], scalars[1], scalars[2], scalars[3]
    dh00 = 1.0 - a[0, 0]
    dh01 = dt - a[0, 1]
    dh11 = (1.0 - 0.5 * dt) - a[1, 1]
    m01 = atp[0, 0] * dh01 + atp[0, 1] * dh11
    m11 = atp[1, 0] * dh01 + atp[1, 1] * dh11
    k00 = 2.0 * atp[0, 0] * dh00
    k10 = 2.0 * atp[1, 0] * dh00
    c_atpdh = 4.0 * (m01 * m01 + m11 * m11)
    c2 = r - p_norm * (dh00 * dh00 + dh01 * dh01 + dh11 * dh11)
    return jnp.stack(
        [delta, -dt, a[1, 0], 2.0 * atp[0, 1], 2.0 * atp[1, 1],
         k00, k10, c_atpdh, p_norm, c2]
    ).astype(jnp.float32)


def _cdiv(a, b):
    return -(-a // b)


def _round_up(n, m):
    return ((n + m - 1) // m) * m


def _choose_tiling(rows, tile_rows):
    """Pick (tile_rows_aligned, padded_rows) with bounded padding and >=2 grid steps
    when there is enough work (v7x megacore sharding)."""
    if rows > 8:
        nt = max(2, _cdiv(rows, tile_rows))
    else:
        nt = 1
    tr = _round_up(_cdiv(rows, nt), 8)
    return tr, nt * tr


@partial(jax.jit, static_argnames=("lane_w", "tile_rows"))
def quad_norm_forward(x, a, atp, scalars, *, lane_w=128, tile_rows=1024):
    B = x.shape[0]

    rows = _cdiv(B, lane_w)
    tr, padded_rows = _choose_tiling(rows, tile_rows)
    padded_b = padded_rows * lane_w

    # Under jit: slice + pad + reshape fuse into one producer copy feeding the kernel.
    x1 = x[:, 0]
    x1 = jnp.pad(x1, (0, padded_b - B))
    x1 = x1.reshape(padded_rows, lane_w)              # batch lane-dense

    s = _fold_scalars(a, atp, scalars)

    out = pl.pallas_call(
        quad_norm_kernel,
        out_shape=jax.ShapeDtypeStruct((padded_rows, lane_w), jnp.float32),
        grid=(padded_rows // tr,),
        in_specs=[
            pl.BlockSpec((tr, lane_w), lambda i: (i, 0)),
            pl.BlockSpec(memory_space=pltpu.MemorySpace.SMEM),
        ],
        out_specs=pl.BlockSpec((tr, lane_w), lambda i: (i, 0)),
        compiler_params=pltpu.CompilerParams(
            dimension_semantics=("parallel",)),
    )(x1, s)

    # Padded tail rows hold garbage; sliced away here (fuses downstream under jit).
    return out.reshape(padded_b)[:B, None]            # (B, 1), f32


def build_buffers(dt=0.1, delta=np.pi / 3.0, epsilon=0.01):
    """Deterministic parameter setup mirroring quad_norm.__init__ (host-side numpy glue)."""
    # A = dynamics.linearization([[0, 0]]) = I + dt * [[0, 1], [-cos(delta), -0.5]]
    A = np.eye(2) + dt * np.array([[0.0, 1.0], [-np.cos(delta), -0.5]])
    # Deterministic symmetric positive-definite P (Lyapunov-style buffer).
    P = np.array([[2.0, 0.5], [0.5, 1.5]], dtype=np.float64)
    ATP = A.T @ P
    Q = A.T @ P @ A - P
    r = np.max(np.abs(np.linalg.eigvals(Q))) - epsilon
    P_norm = np.linalg.norm(P, ord=2)
    scalars = np.array([dt, delta, r, P_norm], dtype=np.float32)
    return (jnp.asarray(A, jnp.float32),
            jnp.asarray(ATP, jnp.float32),
            jnp.asarray(scalars, jnp.float32))


def quad_norm_reference(x, a, atp, scalars):
    """Pure-JAX reference that mirrors the PyTorch forward exactly."""
    dt, delta, r, p_norm = scalars[0], scalars[1], scalars[2], scalars[3]
    x1 = x[:, 0]
    zeros = jnp.zeros_like(x1)
    ones = jnp.ones_like(x1)
    row0 = jnp.stack([zeros, ones], axis=1)
    row1 = jnp.stack([-jnp.cos(x1 + delta), -0.5 * ones], axis=1)
    A_loc = jnp.stack([row0, row1], axis=1)                      # (B, 2, 2)
    Df = jnp.eye(2, dtype=x.dtype)[None] + dt * A_loc
    Dh = Df - a[None]
    ATPDh = jnp.einsum("ij,bjk->bik", atp, Dh)
    atpdh_sq = jnp.sum(ATPDh * ATPDh, axis=(1, 2))
    dh_sq = jnp.sum(Dh * Dh, axis=(1, 2))
    quad = 2.0 * jnp.sqrt(atpdh_sq) + p_norm * dh_sq
    return (r - quad)[:, None]


if __name__ == "__main__":
    key = jax.random.PRNGKey(0)
    B = 300                                     # ragged on purpose (exercises padding)
    x = jax.random.normal(key, (B, 2), dtype=jnp.float32)

    a, atp, scalars = build_buffers()

    out = quad_norm_forward(x, a, atp, scalars)
    out = jax.block_until_ready(out)

    ref = quad_norm_reference(x, a, atp, scalars)
    assert out.shape == (B, 1)
    assert jnp.allclose(out, ref, atol=1e-4, rtol=1e-4), (out, ref)

    print("KERNEL_OK")
</pallas_src>

<mosaic_0001>
module attributes {stable_mosaic.version = 11 : i64} {
  func.func @quad_norm_kernel(%arg0: i32, %arg1: memref<8x128xf32, #tpu.memory_space<vmem>>, %arg2: memref<10xf32, #tpu.memory_space<smem>>, %arg3: memref<8x128xf32, #tpu.memory_space<vmem>>) attributes {dimension_semantics = [#tpu.dimension_semantics<parallel>], iteration_bounds = array<i64: 1>, scalar_prefetch = 0 : i64, scratch_operands = 0 : i64, tpu.core_type = #tpu.core_type<tc>, window_params = [{transform_indices = @transform_0, window_bounds = array<i64: 8, 128>}, {transform_indices = @transform_1, window_bounds = array<i64: 10>}, {transform_indices = @transform_2, window_bounds = array<i64: 8, 128>}]} {
    %c0 = arith.constant 0 : index
    %0 = memref.load %arg2[%c0] : memref<10xf32, #tpu.memory_space<smem>>
    %c1 = arith.constant 1 : index
    %1 = memref.load %arg2[%c1] : memref<10xf32, #tpu.memory_space<smem>>
    %c2 = arith.constant 2 : index
    %2 = memref.load %arg2[%c2] : memref<10xf32, #tpu.memory_space<smem>>
    %c3 = arith.constant 3 : index
    %3 = memref.load %arg2[%c3] : memref<10xf32, #tpu.memory_space<smem>>
    %c4 = arith.constant 4 : index
    %4 = memref.load %arg2[%c4] : memref<10xf32, #tpu.memory_space<smem>>
    %c5 = arith.constant 5 : index
    %5 = memref.load %arg2[%c5] : memref<10xf32, #tpu.memory_space<smem>>
    %c6 = arith.constant 6 : index
    %6 = memref.load %arg2[%c6] : memref<10xf32, #tpu.memory_space<smem>>
    %c7 = arith.constant 7 : index
    %7 = memref.load %arg2[%c7] : memref<10xf32, #tpu.memory_space<smem>>
    %c8 = arith.constant 8 : index
    %8 = memref.load %arg2[%c8] : memref<10xf32, #tpu.memory_space<smem>>
    %c9 = arith.constant 9 : index
    %9 = memref.load %arg2[%c9] : memref<10xf32, #tpu.memory_space<smem>>
    %c0_0 = arith.constant 0 : index
    %c0_1 = arith.constant 0 : index
    %10 = vector.load %arg1[%c0_0, %c0_1] : memref<8x128xf32, #tpu.memory_space<vmem>>, vector<8x128xf32>
    %11 = vector.broadcast %0 : f32 to vector<8x128xf32>
    %12 = arith.addf %10, %11 : vector<8x128xf32>
    %13 = math.cos %12 : vector<8x128xf32>
    %14 = vector.broadcast %1 : f32 to vector<8x128xf32>
    %15 = arith.mulf %14, %13 : vector<8x128xf32>
    %16 = vector.broadcast %2 : f32 to vector<8x128xf32>
    %17 = arith.subf %15, %16 : vector<8x128xf32>
    %18 = vector.broadcast %3 : f32 to vector<8x128xf32>
    %19 = arith.mulf %18, %17 : vector<8x128xf32>
    %20 = vector.broadcast %5 : f32 to vector<8x128xf32>
    %21 = arith.addf %20, %19 : vector<8x128xf32>
    %22 = vector.broadcast %4 : f32 to vector<8x128xf32>
    %23 = arith.mulf %22, %17 : vector<8x128xf32>
    %24 = vector.broadcast %6 : f32 to vector<8x128xf32>
    %25 = arith.addf %24, %23 : vector<8x128xf32>
    %26 = arith.mulf %21, %21 : vector<8x128xf32>
    %27 = arith.mulf %25, %25 : vector<8x128xf32>
    %28 = arith.addf %26, %27 : vector<8x128xf32>
    %29 = vector.broadcast %7 : f32 to vector<8x128xf32>
    %30 = arith.addf %28, %29 : vector<8x128xf32>
    %31 = math.sqrt %30 : vector<8x128xf32>
    %32 = arith.mulf %17, %17 : vector<8x128xf32>
    %33 = vector.broadcast %8 : f32 to vector<8x128xf32>
    %34 = arith.mulf %33, %32 : vector<8x128xf32>
    %35 = vector.broadcast %9 : f32 to vector<8x128xf32>
    %36 = arith.subf %35, %34 : vector<8x128xf32>
    %37 = arith.subf %36, %31 : vector<8x128xf32>
    %c0_2 = arith.constant 0 : index
    %c0_3 = arith.constant 0 : index
    %38 = vector.load %arg3[%c0_2, %c0_3] : memref<8x128xf32, #tpu.memory_space<vmem>>, vector<8x128xf32>
    tpu.vector_store %arg3[%c0_2, %c0_3], %37 {strides = array<i32>} : memref<8x128xf32, #tpu.memory_space<vmem>>, vector<8x128xf32>,
    return
  }
  func.func @transform_0(%arg0: i32) -> (i32, i32) {
    %c0_i32 = arith.constant 0 : i32
    %c0_i32_0 = arith.constant 0 : i32
    return %arg0, %c0_i32 : i32, i32
  }
  func.func @transform_1(%arg0: i32) -> i32 {
    %c0_i32 = arith.constant 0 : i32
    %c0_i32_0 = arith.constant 0 : i32
    return %c0_i32 : i32
  }
  func.func @transform_2(%arg0: i32) -> (i32, i32) {
    %c0_i32 = arith.constant 0 : i32
    %c0_i32_0 = arith.constant 0 : i32
    return %arg0, %c0_i32 : i32, i32
  }
}

</mosaic_0001>

<llo_original>
// kernel: quad_norm_forward.1
$region0: #{quad_norm_forward.1}
  #allocation0 [shape = 'u32[]', space=smem, size = 0x4, offset = 0x4, fixed_abs, tag = 'smem constant byte address 0x4 - core index']
  #allocation1 [shape = 'u32[144,128]{1,0:T(1,128)}', space=vmem, size = 0x12000, scoped, tag = 'internal scratch']
  %s0 = inlined_call_operand.vmem [shape: f32[8,128], index: 0, kind: input, shape index: {}]
  %s1 = inlined_call_operand.vmem [shape: f32[10], index: 1, kind: input, shape index: {}]
  %s2 = inlined_call_operand.vmem [shape: f32[8,128], index: 2, kind: output, shape index: {}]
  %s3 = sld [smem:[#allocation0]]
  $region22: #{quad_norm_forward.1} parent=0
    _
  %s5 = ssub.s32 1, %s3
  %s6 = scalar_select 0, %s5, %s3
  $region1: #{quad_norm_forward.1} parent=0
    #allocation2 [shape = 'u8[512]{0}', space=smem, size = 0x200, scoped, tag = 'input window, operand 1, single buffered']
    #allocation3 [shape = 's32[1]{0}', space=sflag, size = 0x4, scoped, tag = 'scoped memory for quad_norm_forward.1']
    %7 = vsyncpa [#allocation3], 0
    // Predicated region
    $region2: #{quad_norm_forward.1} parent=1 // pred_check
      _
    $region3: #{quad_norm_forward.1} parent=1 // pred_check_branch
      %9 = sbr.rel (0) target = $region5
    $region4: #{quad_norm_forward.1} parent=1 // pred_region
      _
    $region5: #{quad_norm_forward.1} parent=1 // pred_fallthru
      _
    // Predicated region
    $region6: #{quad_norm_forward.1} parent=1 // pred_check
      _
    $region7: #{quad_norm_forward.1} parent=1 // pred_check_branch
      %11 = sbr.rel (0) target = $region9
    $region8: #{quad_norm_forward.1} parent=1 // pred_region
      %s13 = ssub.s32 16, 16
      %14 = vsyncadd [#allocation3], %s13
      %s16 = sshll.u32 %s1, 4
      %s17 = int_to_ptr.vmem [resolvable:$true] %s16
      %19 = dma.vmem_to_smem %s17, 16, [#allocation2], [#allocation3]
    $region9: #{quad_norm_forward.1} parent=1 // pred_fallthru
      _
    // Predicated region
    $region10: #{quad_norm_forward.1} parent=1 // pred_check
      _
    $region11: #{quad_norm_forward.1} parent=1 // pred_check_branch
      %21 = sbr.rel (0) target = $region13
    $region12: #{quad_norm_forward.1} parent=1 // pred_region
      %22 = dma.done [#allocation3], 16
    $region13: #{quad_norm_forward.1} parent=1 // pred_fallthru
      _
    %23 = sfence
    %s24 = sld [smem:[#allocation2]]
    %s25 = sld [smem:[#allocation2 + $0x1]]
    %s26 = sld [smem:[#allocation2 + $0x2]]
    %s27 = sld [smem:[#allocation2 + $0x3]]
    %s28 = sld [smem:[#allocation2 + $0x4]]
    %s29 = sld [smem:[#allocation2 + $0x5]]
    %s30 = sld [smem:[#allocation2 + $0x6]]
    %s31 = sld [smem:[#allocation2 + $0x7]]
    %s32 = sld [smem:[#allocation2 + $0x8]]
    %s33 = sld [smem:[#allocation2 + $0x9]]
    %v34 = vld [vmem:[%s0] sm:$0xff]
    %v35 = vstv %s24
    %v36 = vadd.f32 %v34, %v35
    %v37 = vand.u32 2147483647, %v36
    %vm38 = vcmp.le.f32.partialorder %v37, 0.7853982
    %vm39 = vcmp.lt.s32.totalorder %v36, 0
    %v40 = vand.u32 %v36, 2139095040
    %v41 = vshrl.u32 %v40, 23
    %v42 = vsub.s32 %v41, 127
    %v43 = vand.u32 2147483647, %v36
    %v44 = vand.u32 %v43, 8388607
    %v45 = vor.u32 %v44, 8388608
    %v46 = vsub.s32 0, %v45
    %v47 = vadd.s32 %v42, 1
    %vm48 = vcmp.gt.s32.totalorder %v47, 0
    %v49 = vsel %vm48, %v47, 0
    %v50 = vshrl.u32 %v49, 5
    %v51 = vand.u32 %v49, 31
    %v52 = vsub.s32 32, %v51
    %v53 = vshrl.u32 683565275, %v52
    %v54 = vshll.u32 683565275, %v51
    %v55 = vshrl.u32 2475754826, %v52
    %v56 = vor.u32 %v54, %v55
    %v57 = vshll.u32 2475754826, %v51
    %v58 = vshrl.u32 2131351028, %v52
    %v59 = vor.u32 %v57, %v58
    %v60 = vshll.u32 2131351028, %v51
    %v61 = vshrl.u32 2102212464, %v52
    %v62 = vor.u32 %v60, %v61
    %v63 = vshll.u32 2102212464, %v51
    %v64 = vshrl.u32 920167782, %v52
    %v65 = vor.u32 %v63, %v64
    %v66 = vshll.u32 920167782, %v51
    %v67 = vshrl.u32 1326507024, %v52
    %v68 = vor.u32 %v66, %v67
    %vm69 = vcmp.lt.s32.totalorder %v50, 1
    %vm70 = vcmp.lt.s32.totalorder %v50, 2
    %vm71 = vcmp.lt.s32.totalorder %v50, 3
    %vm72 = vcmp.lt.s32.totalorder %v50, 4
    %v73 = vsel %vm69, %v53, %v56
    %v74 = vsel %vm72, %v62, 2102212464
    %v75 = vsel %vm71, %v59, %v74
    %v76 = vsel %vm70, %v73, %v75
    %v77 = vsel %vm69, %v56, %v59
    %v78 = vsel %vm72, %v65, 920167782
    %v79 = vsel %vm71, %v62, %v78
    %v80 = vsel %vm70, %v77, %v79
    %v81 = vsel %vm69, %v59, %v62
    %v82 = vsel %vm72, %v68, 1326507024
    %v83 = vsel %vm71, %v65, %v82
    %v84 = vsel %vm70, %v81, %v83
    %v85 = vshll.u32 %v45, 8
    %v86 = vmul.u32.u64.compose %v85, %v84
    %v87 = vextract.low.u32 %v86
    %v88 = vextract.high.u32 %v86
    %v89 = vmul.u32.u64.compose %v85, %v80
    %v90 = vextract.low.u32 %v89
    %v91 = vextract.high.u32 %v89
    %v92 = vmul.u32 %v85, %v76
    %v93 = vadd.s32 %v88, %v90
    %vm94 = vc.u32 %v88, %v90
    %v95 = vadd.s32 %v91, 1
    %v96 = vsel %vm94, %v95, %v91
    %v97 = vadd.s32 %v92, %v96
    %v98 = vadd.s32 %v97, 536870912
    %v99 = vshrl.u32 %v98, 30
    %v100 = vshll.u32 %v99, 30
    %v101 = vsub.s32 %v97, %v100
    %vm102 = vcmp.lt.s32.totalorder %v101, 0
    %v103 = vsub.s32 0, %v101
    %v104 = vsel %vm102, %v103, %v101
    %v105 = vclz %v104
    %v106 = vsub.s32 %v105, 2
    %vm107 = vcmp.gt.s32.totalorder 0, %v106
    %v108 = vsel %vm107, 0, %v106
    %v109 = vsub.s32 32, %v108
    %v110 = vshll.u32 %v101, %v108
    %v111 = vshrl.u32 %v93, %v109
    %v112 = vor.u32 %v110, %v111
    %v113 = vsub.s32 4294967266, %v108
    %v114 = vadd.s32 %v113, 127
    %v115 = vshll.u32 %v114, 23
    %v116 = vor.u32 4788187, %v115
    %v117 = vand.u32 2147483647, %v116
    %v119 = vcvt.s32.f32 %v112
    %v120 = vmul.f32 %v119, %v117
    %v121 = vxor.u32 %v120, 2147483648
    %v122 = vsel %vm39, %v121, %v120
    %v123 = vsub.s32 4, %v99
    %v124 = vsel %vm39, %v123, %v99
    %v125 = vsel %vm38, %v36, %v122
    %v126 = vsel %vm38, 0, %v124
    %v127 = vcosq.f32.pop %v125
    %v128 = vsinq.f32.pop %v125
    %vm129 = vweird.f32 %v36
    %v130 = vand.u32 %v126, 3
    %vm131 = vcmp.lt.s32.totalorder %v130, 2
    %vm132 = vcmp.eq.s32.totalorder %v130, 0
    %v133 = vxor.u32 %v128, 2147483648
    %v134 = vsel %vm132, %v127, %v133
    %vm135 = vcmp.eq.s32.totalorder %v130, 2
    %v136 = vxor.u32 %v127, 2147483648
    %v137 = vsel %vm135, %v136, %v128
    %v138 = vsel %vm131, %v134, %v137
    %v139 = vsel %vm129, nan, %v138
    %v140 = vstv %s25
    %v141 = vmul.f32 %v140, %v139
    %v142 = vstv %s26
    %v143 = vsub.f32 %v141, %v142
    %v144 = vstv %s27
    %v145 = vmul.f32 %v144, %v143
    %v146 = vstv %s29
    %v147 = vadd.f32 %v146, %v145
    %v148 = vstv %s28
    %v149 = vmul.f32 %v148, %v143
    %v150 = vstv %s30
    %v151 = vadd.f32 %v150, %v149
    %v152 = vmul.f32 %v147, %v147
    %v153 = vmul.f32 %v151, %v151
    %v154 = vadd.f32 %v152, %v153
    %v155 = vstv %s31
    %v156 = vadd.f32 %v154, %v155
    %v157 = vrsqrt.pop %v156
    %v158 = vmul.f32 %v156, %v157
    %vm159 = vcmp.eq.f32.partialorder %v156, inf
    %v160 = vsel %vm159, %v156, %v158
    %vm161 = vcmp.eq.f32.partialorder %v156, 0.0
    %v162 = vand.u32 %v156, 2147483648
    %v163 = vsel %vm161, %v162, %v160
    %v164 = vmul.f32 %v143, %v143
    %v165 = vstv %s32
    %v166 = vmul.f32 %v165, %v164
    %v167 = vstv %s33
    %v168 = vsub.f32 %v167, %v166
    %v169 = vsub.f32 %v168, %v163
    %170 = vst [vmem:[%s2] sm:$0xff] %v169
    // Predicated region
    $region14: #{quad_norm_forward.1} parent=1 // pred_check
      _
    $region15: #{quad_norm_forward.1} parent=1 // pred_check_branch
      %172 = sbr.rel (0) target = $region17
    $region16: #{quad_norm_forward.1} parent=1 // pred_region
      _
    $region17: #{quad_norm_forward.1} parent=1 // pred_fallthru
      _
    // Predicated region
    $region18: #{quad_norm_forward.1} parent=1 // pred_check
      _
    $region19: #{quad_norm_forward.1} parent=1 // pred_check_branch
      %174 = sbr.rel (0) target = $region21
    $region20: #{quad_norm_forward.1} parent=1 // pred_region
      _
    $region21: #{quad_norm_forward.1} parent=1 // pred_fallthru
      _
    %175 = vsyncpa [#allocation3], 1

</llo_original>
